<compile_context>
chip_gen: v7x
topology: tpu7x:2x2x1
jax: 0.10.0
libtpu: 0.0.40
codegen_flags: <defaults>
</compile_context>

<pallas_src>
import jax
import jax.numpy as jnp
from jax.experimental import pallas as pl
from jax.experimental.pallas import tpu as pltpu


def _round_up(x, m):
    return (x + m - 1) // m * m


def mlp_kernel(x_ref, w1_ref, b1_ref, w23_ref, b23_ref, w4_ref, b4_ref, o_ref):
    """Fused (folded) 3-matmul MLP on one batch tile.

    x_ref:   (TB, 136) bf16 landmark tile.
    w1_ref:  (136, 256) bf16,  b1_ref: (1, 256) f32.
    w23_ref: (256, 128) bf16 (w2@w3, cols zero-padded 64->128), b23_ref: (1,128) f32.
    w4_ref:  (128, 2)  bf16 (rows zero-padded 64->128),         b4_ref:  (1, 2) f32.
    o_ref:   (TB, 2)   f32 gaze output tile.
    """
    wd = w1_ref.dtype  # bf16: both MXU operands in bf16, f32 accumulation
    x = x_ref[...]

    # fc_landmarks[0] + ReLU: Linear(136 -> 256) -> ReLU
    h = jnp.dot(x, w1_ref[...], preferred_element_type=jnp.float32) + b1_ref[...]
    h = jnp.maximum(h, 0.0)

    # folded Linear(256->128) @ Linear(128->64) (no activation in between),
    # then the ReLU of fc_combined.  Hidden lane-padded 64 -> 128.
    h = jnp.dot(h.astype(wd), w23_ref[...],
                preferred_element_type=jnp.float32) + b23_ref[...]
    h = jnp.maximum(h, 0.0)

    # final Linear(64 -> 2) (zero-padded rows contribute nothing)
    out = jnp.dot(h.astype(wd), w4_ref[...],
                  preferred_element_type=jnp.float32) + b4_ref[...]

    o_ref[...] = out.astype(o_ref.dtype)


def init_params(key):
    """PyTorch-default-like Linear init: uniform(+-1/sqrt(fan_in)).
    Weights are [in, out]; biases are [1, out]."""
    dims = [(136, 256), (256, 128), (128, 64), (64, 2)]
    params = []
    for (fan_in, fan_out) in dims:
        key, kw, kb = jax.random.split(key, 3)
        bound = 1.0 / jnp.sqrt(jnp.float32(fan_in))
        w = jax.random.uniform(kw, (fan_in, fan_out), jnp.float32, -bound, bound)
        b = jax.random.uniform(kb, (1, fan_out), jnp.float32, -bound, bound)
        params.append((w, b))
    return params


def prepare_params(params, weight_dtype=jnp.bfloat16):
    """Fold the un-activated w2/w3 pair, lane-pad the 64-wide hidden to 128,
    and cast weights to bf16 (biases stay f32).

    Returns ((w1, b1), (w23, b23), (w4, b4)) with shapes:
      w1  (136, 256) bf16, b1  (1, 256) f32
      w23 (256, 128) bf16, b23 (1, 128) f32   (cols 64..127 are zero padding)
      w4  (128, 2)  bf16,  b4  (1, 2)  f32    (rows 64..127 are zero padding)
    """
    (w1, b1), (w2, b2), (w3, b3), (w4, b4) = params

    # Fold in f32, then quantize the product once.
    w23 = w2 @ w3                    # (256, 64) f32
    b23 = b2 @ w3 + b3               # (1, 64)   f32

    H = 128                          # lane-pad the 64-wide hidden
    w23p = jnp.pad(w23, ((0, 0), (0, H - w23.shape[1])))
    b23p = jnp.pad(b23, ((0, 0), (0, H - b23.shape[1])))
    w4p = jnp.pad(w4, ((0, H - w4.shape[0]), (0, 0)))      # (128, 2)

    return ((w1.astype(weight_dtype), b1),
            (w23p.astype(weight_dtype), b23p),
            (w4p.astype(weight_dtype), b4))


def eye_tracking_forward(landmarks, prepared_params, *, block_b=None):
    """landmarks: [B, 136] -> gaze coords [B, 2] f32."""
    B, F = landmarks.shape
    (w1, b1), (w23, b23), (w4, b4) = prepared_params
    assert w1.shape[0] == F

    # Batch tile: multiple of 16 (bf16 sublane packing).  Large batches get
    # big tiles to amortize per-step overhead; smaller batches are split into
    # >=2 grid steps so both v7x TensorCores get work.
    if block_b is None:
        if B >= 1024:
            block_b = 512
        else:
            block_b = max(16, _round_up(pl.cdiv(B, 2), 16))
    block_b = max(16, _round_up(block_b, 16))
    B_pad = _round_up(B, block_b)

    # Only batch rows are padded; features stay at 136 and go in as bf16.
    x = jnp.pad(landmarks, ((0, B_pad - B), (0, 0))).astype(jnp.bfloat16)

    grid = (B_pad // block_b,)

    def const_spec(shape):
        # Full-array block, same block every grid step -> stays VMEM-resident.
        return pl.BlockSpec(shape, lambda i: (0,) * len(shape))

    out = pl.pallas_call(
        mlp_kernel,
        out_shape=jax.ShapeDtypeStruct((B_pad, 2), jnp.float32),
        grid=grid,
        in_specs=[
            pl.BlockSpec((block_b, F), lambda i: (i, 0)),   # landmarks: batch-tiled
            const_spec(w1.shape), const_spec(b1.shape),
            const_spec(w23.shape), const_spec(b23.shape),
            const_spec(w4.shape), const_spec(b4.shape),
        ],
        out_specs=pl.BlockSpec((block_b, 2), lambda i: (i, 0)),
        compiler_params=pltpu.CompilerParams(
            dimension_semantics=("parallel",)),   # megacore-shardable on v7x
    )(x, w1, b1, w23, b23, w4, b4)

    # Padded batch rows carry bias-derived garbage; slice them off.
    return out[:B]


def reference_forward_matched(landmarks, prepared_params):
    """Pure-JAX reference with the *same* folded bf16 math as the kernel."""
    (w1, b1), (w23, b23), (w4, b4) = prepared_params
    x = landmarks.astype(w1.dtype)

    def lin(h, w, b):
        return jnp.dot(h.astype(w.dtype), w,
                       preferred_element_type=jnp.float32) + b

    h = jnp.maximum(lin(x, w1, b1), 0.0)
    h = jnp.maximum(lin(h, w23, b23), 0.0)
    return lin(h, w4, b4)


def reference_forward_f32(landmarks, params):
    """Full-f32 reference matching the original PyTorch module semantics."""
    (w1, b1), (w2, b2), (w3, b3), (w4, b4) = params
    h = jnp.maximum(landmarks @ w1 + b1, 0.0)
    h = h @ w2 + b2
    h = jnp.maximum(h @ w3 + b3, 0.0)
    return h @ w4 + b4


if __name__ == "__main__":
    key = jax.random.PRNGKey(0)
    key, kx = jax.random.split(key)

    batch = 24
    landmarks = jax.random.normal(kx, (batch, 136), jnp.float32)
    params = init_params(key)
    prepared = prepare_params(params)

    # block_b=16 -> B_pad=32, 2 grid steps: exercises the batch-tiled,
    # weight-resident path (and both TensorCores on v7x).
    out = eye_tracking_forward(landmarks, prepared, block_b=16)
    out = jax.block_until_ready(out)

    assert out.shape == (batch, 2)

    # Exact-math check (same folded bf16-weight computation as the kernel).
    ref_matched = reference_forward_matched(landmarks, prepared)
    assert jnp.allclose(out, ref_matched, atol=1e-3, rtol=1e-3), (
        jnp.max(jnp.abs(out - ref_matched)))

    # Semantic check against the full-f32 PyTorch-equivalent forward
    # (loose tolerance accounts for bf16 weight/input quantization and the
    # f32->bf16 quantization of the folded w2@w3 product).
    ref_f32 = reference_forward_f32(landmarks, params)
    assert jnp.allclose(out, ref_f32, atol=5e-2, rtol=5e-2), (
        jnp.max(jnp.abs(out - ref_f32)))

    print("KERNEL_OK")
</pallas_src>

<mosaic_0001>
module attributes {stable_mosaic.version = 11 : i64} {
  func.func @mlp_kernel(%arg0: i32, %arg1: memref<16x136xbf16, #tpu.memory_space<vmem>>, %arg2: memref<136x256xbf16, #tpu.memory_space<vmem>>, %arg3: memref<1x256xf32, #tpu.memory_space<vmem>>, %arg4: memref<256x128xbf16, #tpu.memory_space<vmem>>, %arg5: memref<1x128xf32, #tpu.memory_space<vmem>>, %arg6: memref<128x2xbf16, #tpu.memory_space<vmem>>, %arg7: memref<1x2xf32, #tpu.memory_space<vmem>>, %arg8: memref<16x2xf32, #tpu.memory_space<vmem>>) attributes {dimension_semantics = [#tpu.dimension_semantics<parallel>], iteration_bounds = array<i64: 2>, scalar_prefetch = 0 : i64, scratch_operands = 0 : i64, tpu.core_type = #tpu.core_type<tc>, window_params = [{transform_indices = @transform_0, window_bounds = array<i64: 16, 136>}, {pipeline_mode = #tpu.pipeline_mode<synchronous>, transform_indices = @transform_1, window_bounds = array<i64: 136, 256>}, {pipeline_mode = #tpu.pipeline_mode<synchronous>, transform_indices = @transform_2, window_bounds = array<i64: 1, 256>}, {pipeline_mode = #tpu.pipeline_mode<synchronous>, transform_indices = @transform_3, window_bounds = array<i64: 256, 128>}, {pipeline_mode = #tpu.pipeline_mode<synchronous>, transform_indices = @transform_4, window_bounds = array<i64: 1, 128>}, {pipeline_mode = #tpu.pipeline_mode<synchronous>, transform_indices = @transform_5, window_bounds = array<i64: 128, 2>}, {pipeline_mode = #tpu.pipeline_mode<synchronous>, transform_indices = @transform_6, window_bounds = array<i64: 1, 2>}, {transform_indices = @transform_7, window_bounds = array<i64: 16, 2>}]} {
    %c0 = arith.constant 0 : index
    %c0_0 = arith.constant 0 : index
    %0 = vector.load %arg1[%c0, %c0_0] : memref<16x136xbf16, #tpu.memory_space<vmem>>, vector<16x136xbf16>
    %c0_1 = arith.constant 0 : index
    %c0_2 = arith.constant 0 : index
    %1 = vector.load %arg2[%c0_1, %c0_2] : memref<136x256xbf16, #tpu.memory_space<vmem>>, vector<136x256xbf16>
    %cst = arith.constant dense<0.000000e+00> : vector<16x256xf32>
    %2 = tpu.matmul %0, %1, %cst {dimension_numbers = #tpu.dot_dimension_numbers<[1], [0], [0], [1], [0, 0, 1, 1], [], []>} : vector<16x136xbf16>, vector<136x256xbf16>, vector<16x256xf32> -> vector<16x256xf32>
    %c0_3 = arith.constant 0 : index
    %c0_4 = arith.constant 0 : index
    %3 = vector.load %arg3[%c0_3, %c0_4] : memref<1x256xf32, #tpu.memory_space<vmem>>, vector<1x256xf32>
    %4 = vector.broadcast %3 : vector<1x256xf32> to vector<16x256xf32>
    %5 = arith.addf %2, %4 : vector<16x256xf32>
    %cst_5 = arith.constant 0.000000e+00 : f32
    %6 = vector.broadcast %cst_5 : f32 to vector<16x256xf32>
    %7 = arith.maximumf %5, %6 : vector<16x256xf32>
    %8 = arith.truncf %7 : vector<16x256xf32> to vector<16x256xbf16>
    %c0_6 = arith.constant 0 : index
    %c0_7 = arith.constant 0 : index
    %9 = vector.load %arg4[%c0_6, %c0_7] : memref<256x128xbf16, #tpu.memory_space<vmem>>, vector<256x128xbf16>
    %cst_8 = arith.constant dense<0.000000e+00> : vector<16x128xf32>
    %10 = tpu.matmul %8, %9, %cst_8 {dimension_numbers = #tpu.dot_dimension_numbers<[1], [0], [0], [1], [0, 0, 1, 1], [], []>} : vector<16x256xbf16>, vector<256x128xbf16>, vector<16x128xf32> -> vector<16x128xf32>
    %c0_9 = arith.constant 0 : index
    %c0_10 = arith.constant 0 : index
    %11 = vector.load %arg5[%c0_9, %c0_10] : memref<1x128xf32, #tpu.memory_space<vmem>>, vector<1x128xf32>
    %12 = vector.broadcast %11 : vector<1x128xf32> to vector<16x128xf32>
    %13 = arith.addf %10, %12 : vector<16x128xf32>
    %cst_11 = arith.constant 0.000000e+00 : f32
    %14 = vector.broadcast %cst_11 : f32 to vector<16x128xf32>
    %15 = arith.maximumf %13, %14 : vector<16x128xf32>
    %16 = arith.truncf %15 : vector<16x128xf32> to vector<16x128xbf16>
    %c0_12 = arith.constant 0 : index
    %c0_13 = arith.constant 0 : index
    %17 = vector.load %arg6[%c0_12, %c0_13] : memref<128x2xbf16, #tpu.memory_space<vmem>>, vector<128x2xbf16>
    %cst_14 = arith.constant dense<0.000000e+00> : vector<16x2xf32>
    %18 = tpu.matmul %16, %17, %cst_14 {dimension_numbers = #tpu.dot_dimension_numbers<[1], [0], [0], [1], [0, 0, 1, 1], [], []>} : vector<16x128xbf16>, vector<128x2xbf16>, vector<16x2xf32> -> vector<16x2xf32>
    %c0_15 = arith.constant 0 : index
    %c0_16 = arith.constant 0 : index
    %19 = vector.load %arg7[%c0_15, %c0_16] : memref<1x2xf32, #tpu.memory_space<vmem>>, vector<1x2xf32>
    %20 = vector.broadcast %19 : vector<1x2xf32> to vector<16x2xf32>
    %21 = arith.addf %18, %20 : vector<16x2xf32>
    %c0_17 = arith.constant 0 : index
    %c0_18 = arith.constant 0 : index
    %22 = vector.load %arg8[%c0_17, %c0_18] : memref<16x2xf32, #tpu.memory_space<vmem>>, vector<16x2xf32>
    tpu.vector_store %arg8[%c0_17, %c0_18], %21 {strides = array<i32>} : memref<16x2xf32, #tpu.memory_space<vmem>>, vector<16x2xf32>,
    return
  }
  func.func @transform_0(%arg0: i32) -> (i32, i32) {
    %c0_i32 = arith.constant 0 : i32
    %c0_i32_0 = arith.constant 0 : i32
    return %arg0, %c0_i32 : i32, i32
  }
  func.func @transform_1(%arg0: i32) -> (i32, i32) {
    %c0_i32 = arith.constant 0 : i32
    %c0_i32_0 = arith.constant 0 : i32
    %c0_i32_1 = arith.constant 0 : i32
    return %c0_i32, %c0_i32_0 : i32, i32
  }
  func.func @transform_2(%arg0: i32) -> (i32, i32) {
    %c0_i32 = arith.constant 0 : i32
    %c0_i32_0 = arith.constant 0 : i32
    %c0_i32_1 = arith.constant 0 : i32
    return %c0_i32, %c0_i32_0 : i32, i32
  }
  func.func @transform_3(%arg0: i32) -> (i32, i32) {
    %c0_i32 = arith.constant 0 : i32
    %c0_i32_0 = arith.constant 0 : i32
    %c0_i32_1 = arith.constant 0 : i32
    return %c0_i32, %c0_i32_0 : i32, i32
  }
  func.func @transform_4(%arg0: i32) -> (i32, i32) {
    %c0_i32 = arith.constant 0 : i32
    %c0_i32_0 = arith.constant 0 : i32
    %c0_i32_1 = arith.constant 0 : i32
    return %c0_i32, %c0_i32_0 : i32, i32
  }
  func.func @transform_5(%arg0: i32) -> (i32, i32) {
    %c0_i32 = arith.constant 0 : i32
    %c0_i32_0 = arith.constant 0 : i32
    %c0_i32_1 = arith.constant 0 : i32
    return %c0_i32, %c0_i32_0 : i32, i32
  }
  func.func @transform_6(%arg0: i32) -> (i32, i32) {
    %c0_i32 = arith.constant 0 : i32
    %c0_i32_0 = arith.constant 0 : i32
    %c0_i32_1 = arith.constant 0 : i32
    return %c0_i32, %c0_i32_0 : i32, i32
  }
  func.func @transform_7(%arg0: i32) -> (i32, i32) {
    %c0_i32 = arith.constant 0 : i32
    %c0_i32_0 = arith.constant 0 : i32
    return %arg0, %c0_i32 : i32, i32
  }
}

</mosaic_0001>

<llo_original>
// kernel: tpu_custom_call.1
$region0: #{tpu_custom_call.1}
  #allocation0 [shape = 'u32[]', space=smem, size = 0x4, offset = 0x4, fixed_abs, tag = 'smem constant byte address 0x4 - core index']
  #allocation1 [shape = 'u32[144,128]{1,0:T(1,128)}', space=vmem, size = 0x12000, scoped, tag = 'internal scratch']
  %s0 = inlined_call_operand.vmem [shape: bf16[32,136], index: 0, kind: input, shape index: {}]
  %s1 = inlined_call_operand.hbm [shape: bf16[136,256], index: 1, kind: input, shape index: {}]
  %s2 = inlined_call_operand.vmem [shape: f32[1,256], index: 2, kind: input, shape index: {}]
  %s3 = inlined_call_operand.hbm [shape: bf16[256,128], index: 3, kind: input, shape index: {}]
  %s4 = inlined_call_operand.vmem [shape: f32[1,128], index: 4, kind: input, shape index: {}]
  %s5 = inlined_call_operand.vmem [shape: bf16[128,2], index: 5, kind: input, shape index: {}]
  %s6 = inlined_call_operand.vmem [shape: f32[1,2], index: 6, kind: input, shape index: {}]
  %s7 = inlined_call_operand.vmem [shape: f32[32,2], index: 7, kind: output, shape index: {}]
  %s8 = sld [smem:[#allocation0]]
  $region69: #{tpu_custom_call.1} parent=0
    _
  %s10 = ssub.s32 1, %s8
  %s11 = scalar_select 0, %s10, %s8
  $region1: #{tpu_custom_call.1} parent=0
    #allocation2 [shape = 'u8[69632]{0}', space=vmem, size = 0x11000, scoped, tag = 'input window, operand 1, single buffered']
    #allocation3 [shape = 's32[2]{0}', space=sflag, size = 0x8, scoped, tag = 'scoped memory for tpu_custom_call.1']
    #allocation4 [shape = 'u8[65536]{0}', space=vmem, size = 0x10000, scoped, tag = 'input window, operand 3, single buffered']
    #allocation5 [shape = 's32[1]{0}', space=sflag, size = 0x4, scoped, tag = 'scoped memory for tpu_custom_call.1']
    %12 = vsyncpa [#allocation3], 0
    %13 = vsyncpa [#allocation5], 0
    loop: start=0, step=1, limit=4
    $region2: #{tpu_custom_call.1} parent=1 // loop_pre_header
      _
    $region3: #{tpu_custom_call.1} parent=1 // loop_header
      %s15 = sphi 0, %s19
      %p16 = scmp.ge.s32.totalorder %s15, 4
      %s25 = sphi 0, %s27
      %s28 = sphi 0, %s25
      %s29 = sphi 0, %s28
      %s45 = sphi 0, %s29
      %s49 = sphi 0, %s49
      %s51 = sphi 0, %s49
      %s52 = sphi 0, %s51
      %s66 = sphi 0, %s52
      %s70 = sphi 0, %s70
      %s72 = sphi 0, %s70
      %s73 = sphi 0, %s72
      %s87 = sphi 0, %s73
      %s91 = sphi 0, %s91
      %s93 = sphi 0, %s91
      %s94 = sphi 0, %s93
      %s108 = sphi 0, %s94
      %s112 = sphi 0, %s112
      %s114 = sphi 0, %s112
      %s115 = sphi 0, %s114
      %s129 = sphi 0, %s115
      %s133 = sphi 0, %s133
      %s135 = sphi 0, %s133
      %s136 = sphi 0, %s135
      %s150 = sphi 0, %s136
      %s154 = sphi 0, %s154
      %s156 = sphi 0, %s154
      %s157 = sphi 0, %s156
      %s171 = sphi 0, %s157
      %s177 = sphi 0, %s179
      %s180 = sphi 0, %s177
      %s181 = sphi 0, %s180
      %s197 = sphi 0, %s181
    $region4: #{tpu_custom_call.1} parent=1 // loop_header_branch
      %18 = sbr.rel (%p16) target = $region8
    $region5: #{tpu_custom_call.1} parent=1 // loop_body
      %s20 = ssub.s32 %s15, 1
      %s21 = ssub.s32 %s15, 2
      %s22 = sadd.s32 %s15, 1
      %s23 = ssub.s32 %s15, %s22
      %p24 = scmp.eq.s32.totalorder %s23, 0
      %s26 = sadd.s32 %s25, 1
      %s27 = scalar_select %p24, %s25, %s26
      %p30 = pneg %p24
      %p31 = scmp.eq.s32.totalorder %s15, 1
      %p32 = por %p30, %p31
      %p33 = scmp.ne.s32.totalorder %s25, %s28
      %p34 = scmp.eq.s32.totalorder %s15, 0
      %p35 = por %p33, %p34
      %p36 = scmp.ne.s32.totalorder %s25, %s28
      %p37 = scmp.eq.s32.totalorder %s20, 1
      %p38 = por %p36, %p37
      %p39 = scmp.ne.s32.totalorder %s28, %s29
      %p40 = scmp.eq.s32.totalorder %s20, 0
      %p41 = por %p39, %p40
      %p42 = scmp.ne.s32.totalorder %s28, %s29
      %p43 = scmp.eq.s32.totalorder %s21, 1
      %p44 = por %p42, %p43
      %p46 = scmp.ne.s32.totalorder %s29, %s45
      %p47 = scmp.eq.s32.totalorder %s21, 0
      %p48 = por %p46, %p47
      %s50 = sadd.s32 %s49, 1
      %p53 = scmp.eq.s32.totalorder %s15, 1
      %p54 = scmp.ne.s32.totalorder %s49, %s51
      %p55 = scmp.eq.s32.totalorder %s15, 0
      %p56 = por %p54, %p55
      %p57 = scmp.ne.s32.totalorder %s49, %s51
      %p58 = scmp.eq.s32.totalorder %s20, 1
      %p59 = por %p57, %p58
      %p60 = scmp.ne.s32.totalorder %s51, %s52
      %p61 = scmp.eq.s32.totalorder %s20, 0
      %p62 = por %p60, %p61
      %p63 = scmp.ne.s32.totalorder %s51, %s52
      %p64 = scmp.eq.s32.totalorder %s21, 1
      %p65 = por %p63, %p64
      %p67 = scmp.ne.s32.totalorder %s52, %s66
      %p68 = scmp.eq.s32.totalorder %s21, 0
      %p69 = por %p67, %p68
      %s71 = sadd.s32 %s70, 1
      %p74 = scmp.eq.s32.totalorder %s15, 1
      %p75 = scmp.ne.s32.totalorder %s70, %s72
      %p76 = scmp.eq.s32.totalorder %s15, 0
      %p77 = por %p75, %p76
      %p78 = scmp.ne.s32.totalorder %s70, %s72
      %p79 = scmp.eq.s32.totalorder %s20, 1
      %p80 = por %p78, %p79
      %p81 = scmp.ne.s32.totalorder %s72, %s73
      %p82 = scmp.eq.s32.totalorder %s20, 0
      %p83 = por %p81, %p82
      %p84 = scmp.ne.s32.totalorder %s72, %s73
      %p85 = scmp.eq.s32.totalorder %s21, 1
      %p86 = por %p84, %p85
      %p88 = scmp.ne.s32.totalorder %s73, %s87
      %p89 = scmp.eq.s32.totalorder %s21, 0
      %p90 = por %p88, %p89
      %s92 = sadd.s32 %s91, 1
      %p95 = scmp.eq.s32.totalorder %s15, 1
      %p96 = scmp.ne.s32.totalorder %s91, %s93
      %p97 = scmp.eq.s32.totalorder %s15, 0
      %p98 = por %p96, %p97
      %p99 = scmp.ne.s32.totalorder %s91, %s93
      %p100 = scmp.eq.s32.totalorder %s20, 1
      %p101 = por %p99, %p100
      %p102 = scmp.ne.s32.totalorder %s93, %s94
      %p103 = scmp.eq.s32.totalorder %s20, 0
      %p104 = por %p102, %p103
      %p105 = scmp.ne.s32.totalorder %s93, %s94
      %p106 = scmp.eq.s32.totalorder %s21, 1
      %p107 = por %p105, %p106
      %p109 = scmp.ne.s32.totalorder %s94, %s108
      %p110 = scmp.eq.s32.totalorder %s21, 0
      %p111 = por %p109, %p110
      %s113 = sadd.s32 %s112, 1
      %p116 = scmp.eq.s32.totalorder %s15, 1
      %p117 = scmp.ne.s32.totalorder %s112, %s114
      %p118 = scmp.eq.s32.totalorder %s15, 0
      %p119 = por %p117, %p118
      %p120 = scmp.ne.s32.totalorder %s112, %s114
      %p121 = scmp.eq.s32.totalorder %s20, 1
      %p122 = por %p120, %p121
      %p123 = scmp.ne.s32.totalorder %s114, %s115
      %p124 = scmp.eq.s32.totalorder %s20, 0
      %p125 = por %p123, %p124
      %p126 = scmp.ne.s32.totalorder %s114, %s115
      %p127 = scmp.eq.s32.totalorder %s21, 1
      %p128 = por %p126, %p127
      %p130 = scmp.ne.s32.totalorder %s115, %s129
      %p131 = scmp.eq.s32.totalorder %s21, 0
      %p132 = por %p130, %p131
      %s134 = sadd.s32 %s133, 1
      %p137 = scmp.eq.s32.totalorder %s15, 1
      %p138 = scmp.ne.s32.totalorder %s133, %s135
      %p139 = scmp.eq.s32.totalorder %s15, 0
      %p140 = por %p138, %p139
      %p141 = scmp.ne.s32.totalorder %s133, %s135
      %p142 = scmp.eq.s32.totalorder %s20, 1
      %p143 = por %p141, %p142
      %p144 = scmp.ne.s32.totalorder %s135, %s136
      %p145 = scmp.eq.s32.totalorder %s20, 0
      %p146 = por %p144, %p145
      %p147 = scmp.ne.s32.totalorder %s135, %s136
      %p148 = scmp.eq.s32.totalorder %s21, 1
      %p149 = por %p147, %p148
      %p151 = scmp.ne.s32.totalorder %s136, %s150
      %p152 = scmp.eq.s32.totalorder %s21, 0
      %p153 = por %p151, %p152
      %s155 = sadd.s32 %s154, 1
      %p158 = scmp.eq.s32.totalorder %s15, 1
      %p159 = scmp.ne.s32.totalorder %s154, %s156
      %p160 = scmp.eq.s32.totalorder %s15, 0
      %p161 = por %p159, %p160
      %p162 = scmp.ne.s32.totalorder %s154, %s156
      %p163 = scmp.eq.s32.totalorder %s20, 1
      %p164 = por %p162, %p163
      %p165 = scmp.ne.s32.totalorder %s156, %s157
      %p166 = scmp.eq.s32.totalorder %s20, 0
      %p167 = por %p165, %p166
      %p168 = scmp.ne.s32.totalorder %s156, %s157
      %p169 = scmp.eq.s32.totalorder %s21, 1
      %p170 = por %p168, %p169
      %p172 = scmp.ne.s32.totalorder %s157, %s171
      %p173 = scmp.eq.s32.totalorder %s21, 0
      %p174 = por %p172, %p173
      %s175 = ssub.s32 %s15, %s22
      %p176 = scmp.eq.s32.totalorder %s175, 0
      %s178 = sadd.s32 %s177, 1
      %s179 = scalar_select %p176, %s177, %s178
      %p182 = pneg %p176
      %p183 = scmp.eq.s32.totalorder %s15, 1
      %p184 = por %p182, %p183
      %p185 = scmp.ne.s32.totalorder %s177, %s180
      %p186 = scmp.eq.s32.totalorder %s15, 0
      %p187 = por %p185, %p186
      %p188 = scmp.ne.s32.totalorder %s177, %s180
      %p189 = scmp.eq.s32.totalorder %s20, 1
      %p190 = por %p188, %p189
      %p191 = scmp.ne.s32.totalorder %s180, %s181
      %p192 = scmp.eq.s32.totalorder %s20, 0
      %p193 = por %p191, %p192
      %p194 = scmp.ne.s32.totalorder %s180, %s181
      %p195 = scmp.eq.s32.totalorder %s21, 1
      %p196 = por %p194, %p195
      %p198 = scmp.ne.s32.totalorder %s181, %s197
      %p199 = scmp.eq.s32.totalorder %s21, 0
      %p200 = por %p198, %p199
      %p201 = scmp.le.s32.totalorder 1, %s15
      %p202 = scmp.lt.s32.totalorder %s15, 3
      %p203 = pnand %p201, %p202
      %p204 = pneg %p203
      // Predicated region
      $region9: #{tpu_custom_call.1} parent=5 // pred_check
        _
      $region10: #{tpu_custom_call.1} parent=5 // pred_check_branch
        %206 = sbr.rel (%p203) target = $region12
      $region11: #{tpu_custom_call.1} parent=5 // pred_region
        %s207 = ssub.s32 %s15, 1
        // Predicated region
        $region13: #{tpu_custom_call.1} parent=11 // pred_check
          %p208 = pneg %p62
        $region14: #{tpu_custom_call.1} parent=11 // pred_check_branch
          %210 = sbr.rel (%p208) target = $region16
        $region15: #{tpu_custom_call.1} parent=11 // pred_region
          %s212 = ssub.s32 2176, 2176
          %213 = vsyncadd [#allocation3], %s212
          %s214 = sshll.u32 [#allocation2], 4
          %s215 = int_to_ptr.vmem [resolvable:$true] %s214
          %220 = dma.hbm_to_vmem [thread:$0]  %s1, 2176, %s215, [#allocation3], 128, 128, 8
        $region16: #{tpu_custom_call.1} parent=11 // pred_fallthru
          _
        // Predicated region
        $region17: #{tpu_custom_call.1} parent=11 // pred_check
          %p221 = pneg %p83
        $region18: #{tpu_custom_call.1} parent=11 // pred_check_branch
          %223 = sbr.rel (%p221) target = $region20
        $region19: #{tpu_custom_call.1} parent=11 // pred_region
          _
        $region20: #{tpu_custom_call.1} parent=11 // pred_fallthru
          _
        // Predicated region
        $region21: #{tpu_custom_call.1} parent=11 // pred_check
          %p224 = pneg %p104
        $region22: #{tpu_custom_call.1} parent=11 // pred_check_branch
          %226 = sbr.rel (%p224) target = $region24
        $region23: #{tpu_custom_call.1} parent=11 // pred_region
          %s228 = ssub.s32 2048, 2048
          %229 = vsyncadd [#allocation5], %s228
          %s230 = sshll.u32 [#allocation4], 4
          %s231 = int_to_ptr.vmem [resolvable:$true] %s230
          %236 = dma.hbm_to_vmem [thread:$0]  %s3, 2048, %s231, [#allocation5], 64, 64, 4
        $region24: #{tpu_custom_call.1} parent=11 // pred_fallthru
          _
        // Predicated region
        $region25: #{tpu_custom_call.1} parent=11 // pred_check
          %p237 = pneg %p125
        $region26: #{tpu_custom_call.1} parent=11 // pred_check_branch
          %239 = sbr.rel (%p237) target = $region28
        $region27: #{tpu_custom_call.1} parent=11 // pred_region
          _
        $region28: #{tpu_custom_call.1} parent=11 // pred_fallthru
          _
        // Predicated region
        $region29: #{tpu_custom_call.1} parent=11 // pred_check
          %p240 = pneg %p146
        $region30: #{tpu_custom_call.1} parent=11 // pred_check_branch
          %242 = sbr.rel (%p240) target = $region32
        $region31: #{tpu_custom_call.1} parent=11 // pred_region
          _
        $region32: #{tpu_custom_call.1} parent=11 // pred_fallthru
          _
        // Predicated region
        $region33: #{tpu_custom_call.1} parent=11 // pred_check
          %p243 = pneg %p167
        $region34: #{tpu_custom_call.1} parent=11 // pred_check_branch
          %245 = sbr.rel (%p243) target = $region36
        $region35: #{tpu_custom_call.1} parent=11 // pred_region
          _
        $region36: #{tpu_custom_call.1} parent=11 // pred_fallthru
          _
      $region12: #{tpu_custom_call.1} parent=5 // pred_fallthru
        _
      %p246 = scmp.lt.s32.totalorder %s15, 2
      // Predicated region
      $region37: #{tpu_custom_call.1} parent=5 // pred_check
        %p247 = pneg %p246
      $region38: #{tpu_custom_call.1} parent=5 // pred_check_branch
        %249 = sbr.rel (%p247) target = $region40
      $region39: #{tpu_custom_call.1} parent=5 // pred_region
        // Predicated region
        $region41: #{tpu_custom_call.1} parent=39 // pred_check
          %p250 = pneg %p35
        $region42: #{tpu_custom_call.1} parent=39 // pred_check_branch
          %252 = sbr.rel (%p250) target = $region44
        $region43: #{tpu_custom_call.1} parent=39 // pred_region
          %s253 = smul.u32 2, %s15
          %p254 = scmp.lt.s32.totalorder %s253, 3
          %s255 = scalar_select %p254, %s253, 3
          %s256 = smul.addr %s255, 2
          %s257 = smul.addr %s256, 4
          %s258 = scalar_lea.vmem %s0, %s257
          %s259 = smul.u32 2, %s15
        $region44: #{tpu_custom_call.1} parent=39 // pred_fallthru
          _
      $region40: #{tpu_custom_call.1} parent=5 // pred_fallthru
        _
      %p260 = scmp.le.s32.totalorder 1, %s15
      %p261 = scmp.lt.s32.totalorder %s15, 3
      %p262 = pnand %p260, %p261
      %p263 = pneg %p262
      // Predicated region
      $region45: #{tpu_custom_call.1} parent=5 // pred_check
        _
      $region46: #{tpu_custom_call.1} parent=5 // pred_check_branch
        %265 = sbr.rel (%p262) target = $region48
      $region47: #{tpu_custom_call.1} parent=5 // pred_region
        %s266 = ssub.s32 %s15, 1
        // Predicated region
        $region49: #{tpu_custom_call.1} parent=47 // pred_check
          %p267 = pneg %p62
        $region50: #{tpu_custom_call.1} parent=47 // pred_check_branch
          %269 = sbr.rel (%p267) target = $region52
        $region51: #{tpu_custom_call.1} parent=47 // pred_region
          %270 = dma.done [#allocation3], 2176
        $region52: #{tpu_custom_call.1} parent=47 // pred_fallthru
          _
        // Predicated region
        $region53: #{tpu_custom_call.1} parent=47 // pred_check
          %p271 = pneg %p104
        $region54: #{tpu_custom_call.1} parent=47 // pred_check_branch
          %273 = sbr.rel (%p271) target = $region56
        $region55: #{tpu_custom_call.1} parent=47 // pred_region
          %274 = dma.done [#allocation5], 2048
        $region56: #{tpu_custom_call.1} parent=47 // pred_fallthru
          _
        %s275 = smul.u32 2, %s20
        %p276 = scmp.lt.s32.totalorder %s275, 3
        %s277 = scalar_select %p276, %s275, 3
        %s278 = smul.addr %s277, 2
        %s279 = smul.addr %s278, 4
        %s280 = scalar_lea.vmem %s0, %s279
        %p281 = pneg %p41
        %p282 = pneg %p38
        %p283 = pneg %p62
        %p284 = pneg %p59
        %p285 = pneg %p83
        %p286 = pneg %p80
        %p287 = pneg %p104
        %p288 = pneg %p101
        %p289 = pneg %p125
        %p290 = pneg %p122
        %p291 = pneg %p146
        %p292 = pneg %p143
        %p293 = pneg %p167
        %p294 = pneg %p164
        %p295 = pneg %p193
        %p296 = pneg %p190
        %s297 = smul.u32 2, %s20
        %p298 = scmp.lt.s32.totalorder %s297, 3
        %s299 = scalar_select %p298, %s297, 3
        %s300 = smul.addr %s299, 8
        %s301 = scalar_lea.vmem %s7, %s300
        %s302 = smul.u32 2, %s20
        %p303 = scmp.lt.s32.totalorder %s302, 3
        %s304 = scalar_select %p303, %s302, 3
        %s305 = smul.addr %s304, 2
        %s306 = smul.addr %s305, 4
        %s307 = scalar_lea.vmem %s0, %s306
        %s308 = smul.u32 2, %s20
        %s309 = smul.u32 2, %s20
        %p310 = scmp.lt.s32.totalorder %s309, 3
        %s311 = scalar_select %p310, %s309, 3
        %s312 = smul.addr %s311, 8
        %s313 = scalar_lea.vmem %s7, %s312
        %s314 = smul.u32 2, %s20
        %v316 = vld [vmem:[%s307] sm:$0xff]
        %v317 = vld [vmem:[%s307 + $0x8] sm:$0xff]
        %v318 = vld [vmem:[#allocation2] sm:$0xff]
        %v319 = vld [vmem:[#allocation2 + $0x8] sm:$0xff]
        %v320 = vld [vmem:[#allocation2 + $0x10] sm:$0xff]
        %v321 = vld [vmem:[#allocation2 + $0x18] sm:$0xff]
        %v322 = vld [vmem:[#allocation2 + $0x20] sm:$0xff]
        %v323 = vld [vmem:[#allocation2 + $0x28] sm:$0xff]
        %v324 = vld [vmem:[#allocation2 + $0x30] sm:$0xff]
        %v325 = vld [vmem:[#allocation2 + $0x38] sm:$0xff]
        %v326 = vld [vmem:[#allocation2 + $0x40] sm:$0xff]
        %v327 = vld [vmem:[#allocation2 + $0x48] sm:$0xff]
        %v328 = vld [vmem:[#allocation2 + $0x50] sm:$0xff]
        %v329 = vld [vmem:[#allocation2 + $0x58] sm:$0xff]
        %v330 = vld [vmem:[#allocation2 + $0x60] sm:$0xff]
        %v331 = vld [vmem:[#allocation2 + $0x68] sm:$0xff]
        %v332 = vld [vmem:[#allocation2 + $0x70] sm:$0xff]
        %v333 = vld [vmem:[#allocation2 + $0x78] sm:$0xff]
        %v334 = vld [vmem:[#allocation2 + $0x80] sm:$0xff]
        %v335 = vld [vmem:[%s2] sm:$0x3]
        %v337 = vlaneseq
        %v338 = vshrl.u32 %v337, 7
        %v339 = vsub.s32 0, %v338
        %v340 = vrot.slane %v335, %v339
        %v341 = vlaneseq
        %v342 = vshrl.u32 %v341, 7
        %v343 = vsub.s32 1, %v342
        %v344 = vrot.slane %v335, %v343
        %v349 = vunpack.c.l.b16 %v316
        %v350 = vunpack.c.h.b16 %v316
        %v351 = vunpack.c.l.b16 %v317
        %v352 = vunpack.c.h.b16 %v317
        %v353 = vpack.c.b16 %v351, %v349
        %v354 = vpack.c.b16 %v352, %v350
        %v373 = vunpack.c.l.b16 %v318
        %v374 = vunpack.c.h.b16 %v318
        %v375 = vunpack.c.l.b16 %v319
        %v376 = vunpack.c.h.b16 %v319
        %v377 = vunpack.c.l.b16 %v320
        %v378 = vunpack.c.h.b16 %v320
        %v379 = vunpack.c.l.b16 %v321
        %v380 = vunpack.c.h.b16 %v321
        %v381 = vunpack.c.l.b16 %v322
        %v382 = vunpack.c.h.b16 %v322
        %v383 = vunpack.c.l.b16 %v323
        %v384 = vunpack.c.h.b16 %v323
        %v385 = vunpack.c.l.b16 %v324
        %v386 = vunpack.c.h.b16 %v324
        %v387 = vunpack.c.l.b16 %v325
        %v388 = vunpack.c.h.b16 %v325
        %v389 = vunpack.c.l.b16 %v326
        %v390 = vunpack.c.h.b16 %v326
        %v391 = vunpack.c.l.b16 %v327
        %v392 = vunpack.c.h.b16 %v327
        %v393 = vunpack.c.l.b16 %v328
        %v394 = vunpack.c.h.b16 %v328
        %v395 = vunpack.c.l.b16 %v329
        %v396 = vunpack.c.h.b16 %v329
        %v397 = vunpack.c.l.b16 %v330
        %v398 = vunpack.c.h.b16 %v330
        %v399 = vunpack.c.l.b16 %v331
        %v400 = vunpack.c.h.b16 %v331
        %v401 = vunpack.c.l.b16 %v332
        %v402 = vunpack.c.h.b16 %v332
        %v403 = vunpack.c.l.b16 %v333
        %v404 = vunpack.c.h.b16 %v333
        %v405 = vunpack.c.l.b16 %v334
        %v406 = vunpack.c.h.b16 %v334
        %v407 = vpack.c.b16 %v375, %v373
        %v408 = vpack.c.b16 %v376, %v374
        %v409 = vpack.c.b16 %v379, %v377
        %v410 = vpack.c.b16 %v380, %v378
        %v411 = vpack.c.b16 %v383, %v381
        %v412 = vpack.c.b16 %v384, %v382
        %v413 = vpack.c.b16 %v387, %v385
        %v414 = vpack.c.b16 %v388, %v386
        %v415 = vpack.c.b16 %v391, %v389
        %v416 = vpack.c.b16 %v392, %v390
        %v417 = vpack.c.b16 %v395, %v393
        %v418 = vpack.c.b16 %v396, %v394
        %v419 = vpack.c.b16 %v399, %v397
        %v420 = vpack.c.b16 %v400, %v398
        %v421 = vpack.c.b16 %v403, %v401
        %v422 = vpack.c.b16 %v404, %v402
        %v423 = vpack.c.b16 %v405, %v405
        %v424 = vpack.c.b16 %v406, %v406
        %vm441 = vcmask 64512
        %v443 = vsel %vm441, %v354, 0
        %vm445 = vcmask 1043456
        %v447 = vsel %vm445, %v423, 0
        %v450 = vsel %vm445, %v424, 0
        %452 = vmatprep.subr.bf16.mxu0 %v408
        %453 = vmatpush1.bf16.msra.mxu0 %v407
        %454 = vmatprep.subr.bf16.mxu0 %v410
        %455 = vmatpush1.bf16.msra.mxu0 %v409
        %456 = vmatprep.subr.bf16.mxu0 %v412
        %457 = vmatpush1.bf16.msra.mxu0 %v411
        %458 = vmatprep.subr.bf16.mxu0 %v414
        %459 = vmatpush1.bf16.msra.mxu0 %v413
        %460 = vmatprep.subr.bf16.mxu0 %v416
        %461 = vmatpush1.bf16.msra.mxu0 %v415
        %462 = vmatprep.subr.bf16.mxu0 %v418
        %463 = vmatpush1.bf16.msra.mxu0 %v417
        %464 = vmatprep.subr.bf16.mxu0 %v420
        %465 = vmatpush1.bf16.msra.mxu0 %v419
        %466 = vmatprep.subr.bf16.mxu0 %v422
        %467 = vmatpush1.bf16.msra.mxu0 %v421
        %468 = vmatprep.subr.bf16.mxu0 %v450
        %469 = vmatpush1.bf16.msra.mxu0 %v447
        %470 = vmatprep.subr.bf16.mxu0 0
        %471 = vmatpush1.bf16.msra.mxu0 0
        %472 = vmatprep.subr.bf16.mxu0 0
        %473 = vmatpush1.bf16.msra.mxu0 0
        %474 = vmatprep.subr.bf16.mxu0 0
        %475 = vmatpush1.bf16.msra.mxu0 0
        %476 = vmatprep.subr.bf16.mxu0 0
        %477 = vmatpush1.bf16.msra.mxu0 0
        %478 = vmatprep.subr.bf16.mxu0 0
        %479 = vmatpush1.bf16.msra.mxu0 0
        %480 = vmatprep.subr.bf16.mxu0 0
        %481 = vmatpush1.bf16.msra.mxu0 0
        %482 = vmatprep.subr.bf16.mxu0 0
        %483 = vmatpush1.bf16.msra.mxu0 0
        %484 = vmatprep.mubr.bf16.mxu0 %v443
        %485 = vmatmul.mubr.bf16.gmra.mrb[0].mxu0 %v353
        %v486 = vpop.f32.mrb[0].mxu0
        %v487 = vadd.f32 %v340, %v486
        %v488 = vpop.f32.mrb[0].mxu0
        %v489 = vadd.f32 %v344, %v488
        %v490 = vpop.f32.mrb[0].mxu0
        %v491 = vadd.f32 %v340, %v490
        %v492 = vpop.f32.mrb[0].mxu0
        %v493 = vadd.f32 %v344, %v492
        %494 = vdwg.mxu0
        %v495 = vmax.f32 %v487, 0.0
        %v496 = vmax.f32 %v489, 0.0
        %v497 = vmax.f32 %v491, 0.0
        %v498 = vmax.f32 %v493, 0.0
        %v499 = vpack.c.bf16 %v497, %v495
        %v500 = vpack.c.bf16 %v498, %v496
        %v501 = vld [vmem:[#allocation4] sm:$0xf]
        %v502 = vld [vmem:[#allocation4 + $0x4] sm:$0xf]
        %v503 = vld [vmem:[#allocation4 + $0x8] sm:$0xf]
        %v504 = vld [vmem:[#allocation4 + $0xc] sm:$0xf]
        %v505 = vld [vmem:[#allocation4 + $0x10] sm:$0xf]
        %v506 = vld [vmem:[#allocation4 + $0x14] sm:$0xf]
        %v507 = vld [vmem:[#allocation4 + $0x18] sm:$0xf]
        %v508 = vld [vmem:[#allocation4 + $0x1c] sm:$0xf]
        %v509 = vld [vmem:[#allocation4 + $0x20] sm:$0xf]
        %v510 = vld [vmem:[#allocation4 + $0x24] sm:$0xf]
        %v511 = vld [vmem:[#allocation4 + $0x28] sm:$0xf]
        %v512 = vld [vmem:[#allocation4 + $0x2c] sm:$0xf]
        %v513 = vld [vmem:[#allocation4 + $0x30] sm:$0xf]
        %v514 = vld [vmem:[#allocation4 + $0x34] sm:$0xf]
        %v515 = vld [vmem:[#allocation4 + $0x38] sm:$0xf]
        %v516 = vld [vmem:[#allocation4 + $0x3c] sm:$0xf]
        %v517 = vld [vmem:[#allocation4 + $0x40] sm:$0xf]
        %v518 = vld [vmem:[#allocation4 + $0x44] sm:$0xf]
        %v519 = vld [vmem:[#allocation4 + $0x48] sm:$0xf]
        %v520 = vld [vmem:[#allocation4 + $0x4c] sm:$0xf]
        %v521 = vld [vmem:[#allocation4 + $0x50] sm:$0xf]
        %v522 = vld [vmem:[#allocation4 + $0x54] sm:$0xf]
        %v523 = vld [vmem:[#allocation4 + $0x58] sm:$0xf]
        %v524 = vld [vmem:[#allocation4 + $0x5c] sm:$0xf]
        %v525 = vld [vmem:[#allocation4 + $0x60] sm:$0xf]
        %v526 = vld [vmem:[#allocation4 + $0x64] sm:$0xf]
        %v527 = vld [vmem:[#allocation4 + $0x68] sm:$0xf]
        %v528 = vld [vmem:[#allocation4 + $0x6c] sm:$0xf]
        %v529 = vld [vmem:[#allocation4 + $0x70] sm:$0xf]
        %v530 = vld [vmem:[#allocation4 + $0x74] sm:$0xf]
        %v531 = vld [vmem:[#allocation4 + $0x78] sm:$0xf]
        %v532 = vld [vmem:[#allocation4 + $0x7c] sm:$0xf]
        %v533 = vld [vmem:[%s4] sm:$0x1]
        %v535 = vlaneseq
        %v536 = vshrl.u32 %v535, 7
        %v537 = vsub.s32 0, %v536
        %v538 = vrot.slane %v533, %v537
        %v572 = vunpack.c.l.b16 %v501
        %v573 = vunpack.c.l.b16 %v502
        %v574 = vunpack.c.l.b16 %v503
        %v575 = vunpack.c.l.b16 %v504
        %v576 = vunpack.c.l.b16 %v505
        %v577 = vunpack.c.l.b16 %v506
        %v578 = vunpack.c.l.b16 %v507
        %v579 = vunpack.c.l.b16 %v508
        %v580 = vunpack.c.l.b16 %v509
        %v581 = vunpack.c.l.b16 %v510
        %v582 = vunpack.c.l.b16 %v511
        %v583 = vunpack.c.l.b16 %v512
        %v584 = vunpack.c.l.b16 %v513
        %v585 = vunpack.c.l.b16 %v514
        %v586 = vunpack.c.l.b16 %v515
        %v587 = vunpack.c.l.b16 %v516
        %v588 = vunpack.c.l.b16 %v517
        %v589 = vunpack.c.l.b16 %v518
        %v590 = vunpack.c.l.b16 %v519
        %v591 = vunpack.c.l.b16 %v520
        %v592 = vunpack.c.l.b16 %v521
        %v593 = vunpack.c.l.b16 %v522
        %v594 = vunpack.c.l.b16 %v523
        %v595 = vunpack.c.l.b16 %v524
        %v596 = vunpack.c.l.b16 %v525
        %v597 = vunpack.c.l.b16 %v526
        %v598 = vunpack.c.l.b16 %v527
        %v599 = vunpack.c.l.b16 %v528
        %v600 = vunpack.c.l.b16 %v529
        %v601 = vunpack.c.l.b16 %v530
        %v602 = vunpack.c.l.b16 %v531
        %v603 = vunpack.c.l.b16 %v532
        %v604 = vpack.c.b16 %v573, %v572
        %v605 = vpack.c.b16 %v575, %v574
        %v606 = vpack.c.b16 %v577, %v576
        %v607 = vpack.c.b16 %v579, %v578
        %v608 = vpack.c.b16 %v581, %v580
        %v609 = vpack.c.b16 %v583, %v582
        %v610 = vpack.c.b16 %v585, %v584
        %v611 = vpack.c.b16 %v587, %v586
        %v612 = vpack.c.b16 %v589, %v588
        %v613 = vpack.c.b16 %v591, %v590
        %v614 = vpack.c.b16 %v593, %v592
        %v615 = vpack.c.b16 %v595, %v594
        %v616 = vpack.c.b16 %v597, %v596
        %v617 = vpack.c.b16 %v599, %v598
        %v618 = vpack.c.b16 %v601, %v600
        %v619 = vpack.c.b16 %v603, %v602
        %636 = vmatprep.subr.bf16.mxu0 0
        %637 = vmatpush1.bf16.msra.mxu0 %v604
        %638 = vmatprep.subr.bf16.mxu0 0
        %639 = vmatpush1.bf16.msra.mxu0 %v605
        %640 = vmatprep.subr.bf16.mxu0 0
        %641 = vmatpush1.bf16.msra.mxu0 %v606
        %642 = vmatprep.subr.bf16.mxu0 0
        %643 = vmatpush1.bf16.msra.mxu0 %v607
        %644 = vmatprep.subr.bf16.mxu0 0
        %645 = vmatpush1.bf16.msra.mxu0 %v608
        %646 = vmatprep.subr.bf16.mxu0 0
        %647 = vmatpush1.bf16.msra.mxu0 %v609
        %648 = vmatprep.subr.bf16.mxu0 0
        %649 = vmatpush1.bf16.msra.mxu0 %v610
        %650 = vmatprep.subr.bf16.mxu0 0
        %651 = vmatpush1.bf16.msra.mxu0 %v611
        %652 = vmatprep.subr.bf16.mxu0 0
        %653 = vmatpush1.bf16.msra.mxu0 %v612
        %654 = vmatprep.subr.bf16.mxu0 0
        %655 = vmatpush1.bf16.msra.mxu0 %v613
        %656 = vmatprep.subr.bf16.mxu0 0
        %657 = vmatpush1.bf16.msra.mxu0 %v614
        %658 = vmatprep.subr.bf16.mxu0 0
        %659 = vmatpush1.bf16.msra.mxu0 %v615
        %660 = vmatprep.subr.bf16.mxu0 0
        %661 = vmatpush1.bf16.msra.mxu0 %v616
        %662 = vmatprep.subr.bf16.mxu0 0
        %663 = vmatpush1.bf16.msra.mxu0 %v617
        %664 = vmatprep.subr.bf16.mxu0 0
        %665 = vmatpush1.bf16.msra.mxu0 %v618
        %666 = vmatprep.subr.bf16.mxu0 0
        %667 = vmatpush1.bf16.msra.mxu0 %v619
        %668 = vmatprep.mubr.bf16.mxu0 %v500
        %669 = vmatmul.mubr.bf16.gmra.mrb[0].mxu0 %v499
        %v670 = vpop.f32.mrb[0].mxu0
        %v671 = vadd.f32 %v538, %v670
        %v672 = vpop.f32.mrb[0].mxu0
        %v673 = vpop.f32.mrb[0].mxu0
        %v674 = vadd.f32 %v538, %v673
        %v675 = vpop.f32.mrb[0].mxu0
        %676 = vdwg.mxu0
        %v677 = vmax.f32 %v671, 0.0
        %v678 = vmax.f32 %v674, 0.0
        %v679 = vpack.c.bf16 %v678, %v677
        %v680 = vld [vmem:[%s5] sm:$0xf]
        %v681 = vld [vmem:[%s5 + $0x4] sm:$0xf]
        %v682 = vld [vmem:[%s5 + $0x8] sm:$0xf]
        %v683 = vld [vmem:[%s5 + $0xc] sm:$0xf]
        %v684 = vld [vmem:[%s5 + $0x10] sm:$0xf]
        %v685 = vld [vmem:[%s5 + $0x14] sm:$0xf]
        %v686 = vld [vmem:[%s5 + $0x18] sm:$0xf]
        %v687 = vld [vmem:[%s5 + $0x1c] sm:$0xf]
        %v688 = vld [vmem:[%s5 + $0x20] sm:$0xf]
        %v689 = vld [vmem:[%s5 + $0x24] sm:$0xf]
        %v690 = vld [vmem:[%s5 + $0x28] sm:$0xf]
        %v691 = vld [vmem:[%s5 + $0x2c] sm:$0xf]
        %v692 = vld [vmem:[%s5 + $0x30] sm:$0xf]
        %v693 = vld [vmem:[%s5 + $0x34] sm:$0xf]
        %v694 = vld [vmem:[%s5 + $0x38] sm:$0xf]
        %v695 = vld [vmem:[%s5 + $0x3c] sm:$0xf]
        %v696 = vld [vmem:[%s6] sm:$0x1]
        %v698 = vlaneseq
        %v699 = vshrl.u32 %v698, 7
        %v700 = vsub.s32 0, %v699
        %v701 = vrot.slane %v696, %v700
        %v719 = vunpack.c.l.b16 %v680
        %v720 = vunpack.c.l.b16 %v681
        %v721 = vunpack.c.l.b16 %v682
        %v722 = vunpack.c.l.b16 %v683
        %v723 = vunpack.c.l.b16 %v684
        %v724 = vunpack.c.l.b16 %v685
        %v725 = vunpack.c.l.b16 %v686
        %v726 = vunpack.c.l.b16 %v687
        %v727 = vunpack.c.l.b16 %v688
        %v728 = vunpack.c.l.b16 %v689
        %v729 = vunpack.c.l.b16 %v690
        %v730 = vunpack.c.l.b16 %v691
        %v731 = vunpack.c.l.b16 %v692
        %v732 = vunpack.c.l.b16 %v693
        %v733 = vunpack.c.l.b16 %v694
        %v734 = vunpack.c.l.b16 %v695
        %v735 = vpack.c.b16 %v720, %v719
        %v736 = vpack.c.b16 %v722, %v721
        %v737 = vpack.c.b16 %v724, %v723
        %v738 = vpack.c.b16 %v726, %v725
        %v739 = vpack.c.b16 %v728, %v727
        %v740 = vpack.c.b16 %v730, %v729
        %v741 = vpack.c.b16 %v732, %v731
        %v742 = vpack.c.b16 %v734, %v733
        %751 = vmatprep.subr.bf16.mxu0 0
        %752 = vmatpush1.bf16.msra.mxu0 %v735
        %753 = vmatprep.subr.bf16.mxu0 0
        %754 = vmatpush1.bf16.msra.mxu0 %v736
        %755 = vmatprep.subr.bf16.mxu0 0
        %756 = vmatpush1.bf16.msra.mxu0 %v737
        %757 = vmatprep.subr.bf16.mxu0 0
        %758 = vmatpush1.bf16.msra.mxu0 %v738
        %759 = vmatprep.subr.bf16.mxu0 0
        %760 = vmatpush1.bf16.msra.mxu0 %v739
        %761 = vmatprep.subr.bf16.mxu0 0
        %762 = vmatpush1.bf16.msra.mxu0 %v740
        %763 = vmatprep.subr.bf16.mxu0 0
        %764 = vmatpush1.bf16.msra.mxu0 %v741
        %765 = vmatprep.subr.bf16.mxu0 0
        %766 = vmatpush1.bf16.msra.mxu0 %v742
        %767 = vmatprep.subr.bf16.mxu0 0
        %768 = vmatpush1.bf16.msra.mxu0 0
        %769 = vmatprep.subr.bf16.mxu0 0
        %770 = vmatpush1.bf16.msra.mxu0 0
        %771 = vmatprep.subr.bf16.mxu0 0
        %772 = vmatpush1.bf16.msra.mxu0 0
        %773 = vmatprep.subr.bf16.mxu0 0
        %774 = vmatpush1.bf16.msra.mxu0 0
        %775 = vmatprep.subr.bf16.mxu0 0
        %776 = vmatpush1.bf16.msra.mxu0 0
        %777 = vmatprep.subr.bf16.mxu0 0
        %778 = vmatpush1.bf16.msra.mxu0 0
        %779 = vmatprep.subr.bf16.mxu0 0
        %780 = vmatpush1.bf16.msra.mxu0 0
        %781 = vmatprep.subr.bf16.mxu0 0
        %782 = vmatpush1.bf16.msra.mxu0 0
        %783 = vmatprep.mubr.bf16.mxu0 0
        %784 = vmatmul.mubr.bf16.gmra.mrb[0].mxu0 %v679
        %v785 = vpop.f32.mrb[0].mxu0
        %v786 = vadd.f32 %v701, %v785
        %v787 = vpop.f32.mrb[0].mxu0
        %v788 = vpop.f32.mrb[0].mxu0
        %v789 = vadd.f32 %v701, %v788
        %v790 = vpop.f32.mrb[0].mxu0
        %791 = vdwg.mxu0
        %vm792 = vcmask 15360
        %793 = vst.msk [vmem:[%s313] sm:$0xff] %vm792, %v786
        %794 = vst.msk [vmem:[%s313 + $0x8] sm:$0xff] %vm792, %v789
        %s795 = smul.u32 2, %s20
        %p796 = scmp.lt.s32.totalorder %s795, 3
        %s797 = scalar_select %p796, %s795, 3
        %s798 = smul.addr %s797, 8
        %s799 = scalar_lea.vmem %s7, %s798
        // Predicated region
        $region57: #{tpu_custom_call.1} parent=47 // pred_check
          %p800 = pneg %p190
        $region58: #{tpu_custom_call.1} parent=47 // pred_check_branch
          %802 = sbr.rel (%p800) target = $region60
        $region59: #{tpu_custom_call.1} parent=47 // pred_region
          %s803 = smul.u32 2, %s20
        $region60: #{tpu_custom_call.1} parent=47 // pred_fallthru
          _
      $region48: #{tpu_custom_call.1} parent=5 // pred_fallthru
        _
      %p804 = scmp.le.s32.totalorder 2, %s15
      // Predicated region
      $region61: #{tpu_custom_call.1} parent=5 // pred_check
        %p805 = pneg %p804
      $region62: #{tpu_custom_call.1} parent=5 // pred_check_branch
        %807 = sbr.rel (%p805) target = $region64
      $region63: #{tpu_custom_call.1} parent=5 // pred_region
        %s808 = ssub.s32 %s15, 2
        // Predicated region
        $region65: #{tpu_custom_call.1} parent=63 // pred_check
          %p809 = pneg %p196
        $region66: #{tpu_custom_call.1} parent=63 // pred_check_branch
          %811 = sbr.rel (%p809) target = $region68
        $region67: #{tpu_custom_call.1} parent=63 // pred_region
          %s812 = smul.u32 2, %s21
          %p813 = scmp.lt.s32.totalorder %s812, 3
          %s814 = scalar_select %p813, %s812, 3
          %s815 = smul.addr %s814, 8
          %s816 = scalar_lea.vmem %s7, %s815
        $region68: #{tpu_custom_call.1} parent=63 // pred_fallthru
          _
      $region64: #{tpu_custom_call.1} parent=5 // pred_fallthru
        _
    $region6: #{tpu_custom_call.1} parent=1 // loop_footer
      %s19 = sadd.s32 1, %s15
    $region7: #{tpu_custom_call.1} parent=1 // loop_footer_branch
      %14 = sbr.rel target = $region3
    $region8: #{tpu_custom_call.1} parent=1 // loop_exit
      _
    %817 = vsyncpa [#allocation3], 1
    %s818 = scalar_lea.sflag [#allocation3], 1
    %819 = vsyncpa %s818, 1
    %820 = vsyncpa [#allocation5], 1

</llo_original>
